<compile_context>
chip_gen: v7x
topology: tpu7x:2x2x1
jax: 0.10.0
libtpu: 0.0.40
codegen_flags: <defaults>
</compile_context>

<pallas_src>
import functools

import jax
import jax.numpy as jnp
from jax.experimental import pallas as pl
from jax.experimental.pallas import tpu as pltpu


def _round_up(a, b):
    return (a + b - 1) // b * b


def _vmem_capacity_bytes():
    try:
        return int(pltpu.get_tpu_info().vmem_capacity_bytes)
    except Exception:
        # Unknown / query unsupported -> assume the smallest (v7x per-TC) VMEM.
        return 64 << 20


def _gated_mlp_kernel(x_ref, w12_ref, w3_ref, o_ref, acc_ref, *, tn):
    # x_ref: (tm, D)   w12_ref: (D, 2*tn)   w3_ref: (tn, O)
    # o_ref: (tm, O)   acc_ref: (tm, O) f32 scratch
    h = pl.program_id(1)

    x = x_ref[...]
    # One fused MXU matmul for the interleaved W1|W2 stripe, f32 accumulation.
    h12 = jnp.dot(x, w12_ref[...], preferred_element_type=jnp.float32)
    h1 = h12[:, :tn]          # split at a 128-aligned lane boundary: free
    h2 = h12[:, tn:]
    # SiLU gate + elementwise product in f32 (VPU/EUP), then second MXU matmul.
    gated = (h1 * jax.nn.sigmoid(h1)) * h2
    part = jnp.dot(gated.astype(w3_ref.dtype), w3_ref[...],
                   preferred_element_type=jnp.float32)

    @pl.when(h == 0)
    def _():
        acc_ref[...] = part           # direct write: no zero-fill + RMW

    @pl.when(h > 0)
    def _():
        acc_ref[...] += part

    @pl.when(h == pl.num_programs(1) - 1)
    def _():
        o_ref[...] = acc_ref[...].astype(o_ref.dtype)


@functools.partial(jax.jit, static_argnames=("tm", "tn", "compute_dtype"))
def parallel_gated_mlp(x, w1, w2, w3, *, tm=None, tn=None,
                       compute_dtype=jnp.bfloat16):
    """x: (..., dim); w1,w2: (dim, hidden); w3: (hidden, out_dim).

    Weights are stored transposed vs. torch nn.Linear (i.e. (in, out)) so every
    matmul in the kernel is a plain `x @ W` on the MXU.
    """
    orig_dtype = x.dtype
    dim = x.shape[-1]
    hidden = w1.shape[1]
    out_dim = w3.shape[1]
    lead = x.shape[:-1]
    x2d = x.reshape(-1, dim)
    M = x2d.shape[0]

    bpe = jnp.dtype(compute_dtype).itemsize

    # ---- chip-aware VMEM budget --------------------------------------------
    vmem_cap = _vmem_capacity_bytes()
    big_vmem = vmem_cap >= (100 << 20)            # v5e / v6e: 128 MiB per TC
    budget = (96 << 20) if big_vmem else (44 << 20)
    limit_cap = (104 << 20) if big_vmem else (54 << 20)

    def fixed_bytes(tm_):
        return (2 * tm_ * dim * bpe               # x tile (double-buffered)
                + 2 * tm_ * out_dim * bpe         # out tile (double-buffered)
                + tm_ * out_dim * 4)              # f32 accumulator
    per_tn = 2 * (2 * dim + out_dim) * bpe        # W1|W2 + W3 stripes, 2-buf

    def pick_tn(tm_):
        avail = budget - fixed_bytes(tm_)
        t = max(0, avail // per_tn)
        t_aligned = (t // 128) * 128
        h_aligned = _round_up(hidden, 128)
        if h_aligned <= t_aligned:
            return h_aligned                      # whole hidden in one stripe
        if t_aligned >= 256:
            return (t_aligned // 256) * 256       # 256-wide MXU alignment
        return 128                                # smallest usable stripe

    # ---- row tile ------------------------------------------------------------
    if tm is None:
        if M <= 16:
            tm = max(16, _round_up(M, 16))
        elif M <= 512:
            # >= 2 M tiles so both v7x TensorCores get work (M axis "parallel").
            tm = min(256, _round_up(-(-M // 2), 16))
        else:
            tm = 512 if big_vmem else 256
        # For big dim/out_dim the tm-proportional fixed term can squash tn;
        # drop tm (down to 128) before letting tn fall below 256.
        if tn is None and hidden >= 256 and tm > 128:
            for cand in (tm, 256, 128):
                if cand <= tm and pick_tn(cand) >= 256:
                    tm = cand
                    break
            else:
                tm = 128

    # ---- hidden tile ---------------------------------------------------------
    if tn is None:
        tn = pick_tn(tm)

    M_pad = _round_up(M, tm)
    H_pad = _round_up(hidden, tn)
    n_h = H_pad // tn

    # Cast to the compute dtype and zero-pad ragged dims (zero rows / zero
    # hidden slices contribute exactly zero to the output).
    xc = x2d.astype(compute_dtype)
    if M_pad != M:
        xc = jnp.pad(xc, ((0, M_pad - M), (0, 0)))
    w1c = w1.astype(compute_dtype)
    w2c = w2.astype(compute_dtype)
    w3c = w3.astype(compute_dtype)
    if H_pad != hidden:
        pad_h = H_pad - hidden
        w1c = jnp.pad(w1c, ((0, 0), (0, pad_h)))
        w2c = jnp.pad(w2c, ((0, 0), (0, pad_h)))
        w3c = jnp.pad(w3c, ((0, pad_h), (0, 0)))

    # Interleave per-tn blocks of W1/W2 so each H step streams one contiguous
    # (dim, 2*tn) stripe: [W1_blk_h | W2_blk_h].
    w12 = jnp.concatenate(
        [w1c.reshape(dim, n_h, tn), w2c.reshape(dim, n_h, tn)],
        axis=2).reshape(dim, 2 * H_pad)

    grid = (M_pad // tm, n_h)

    vmem_need = fixed_bytes(tm) + per_tn * tn
    vmem_limit = int(min(max(vmem_need * 5 // 4, 32 << 20), limit_cap))
    if vmem_need > vmem_limit:
        # Only reachable with explicit oversize tm/tn: provision it anyway but
        # stay below physical VMEM so the compiler keeps internal scratch.
        vmem_limit = int(min(vmem_need * 9 // 8, vmem_cap - (4 << 20)))

    flops = 2 * M_pad * (2 * dim * H_pad + H_pad * out_dim)
    bytes_accessed = (
        M_pad * dim * bpe
        + (M_pad // tm) * (2 * dim * H_pad + H_pad * out_dim) * bpe
        + M_pad * out_dim * jnp.dtype(orig_dtype).itemsize)

    out = pl.pallas_call(
        functools.partial(_gated_mlp_kernel, tn=tn),
        out_shape=jax.ShapeDtypeStruct((M_pad, out_dim), orig_dtype),
        grid_spec=pltpu.PrefetchScalarGridSpec(
            num_scalar_prefetch=0,
            grid=grid,
            in_specs=[
                pl.BlockSpec((tm, dim), lambda i, h: (i, 0)),       # x rows
                pl.BlockSpec((dim, 2 * tn), lambda i, h: (0, h)),   # W1|W2 stripe
                pl.BlockSpec((tn, out_dim), lambda i, h: (h, 0)),   # W3 stripe
            ],
            out_specs=pl.BlockSpec((tm, out_dim), lambda i, h: (i, 0)),
            scratch_shapes=[pltpu.VMEM((tm, out_dim), jnp.float32)],
        ),
        compiler_params=pltpu.CompilerParams(
            dimension_semantics=("parallel", "arbitrary"),
            vmem_limit_bytes=vmem_limit),
        cost_estimate=pl.CostEstimate(
            flops=flops,
            transcendentals=M_pad * H_pad,
            bytes_accessed=bytes_accessed),
    )(xc, w12, w3c)

    if M_pad != M:
        out = out[:M]
    return out.reshape(*lead, out_dim)


def _init_params(key, dim, hidden_dim_arg, multiple_of, ffn_dim_multiplier=None,
                 out_dim=None, dtype=jnp.float32):
    # Replicates the hidden_dim arithmetic from ParallelGatedMLP.__init__.
    hidden_dim = int(2 * hidden_dim_arg / 3)
    if ffn_dim_multiplier is not None:
        hidden_dim = int(ffn_dim_multiplier * hidden_dim)
    hidden_dim = multiple_of * ((hidden_dim + multiple_of - 1) // multiple_of)
    out_dim = out_dim or hidden_dim

    k1, k2, k3 = jax.random.split(key, 3)
    # nn.Linear(bias=False) default init: U(-1/sqrt(fan_in), 1/sqrt(fan_in)).
    # Stored already transposed to (in, out) for the kernel layout.
    b1 = 1.0 / (dim ** 0.5)
    b3 = 1.0 / (hidden_dim ** 0.5)
    w1 = jax.random.uniform(k1, (dim, hidden_dim), dtype, -b1, b1)
    w2 = jax.random.uniform(k2, (dim, hidden_dim), dtype, -b1, b1)
    w3 = jax.random.uniform(k3, (hidden_dim, out_dim), dtype, -b3, b3)
    return w1, w2, w3


def _ref_mlp(x, w1, w2, w3):
    h1 = x @ w1
    return (h1 * jax.nn.sigmoid(h1) * (x @ w2)) @ w3


if __name__ == "__main__":
    key = jax.random.PRNGKey(0)
    kx, kp = jax.random.split(key)

    # --- Config 1: dim=128, hidden_dim=192 -> hidden=128, out_dim=hidden=128
    #     (module default out_dim), auto tile sizing. ------------------------
    dim, hidden_dim_arg, multiple_of = 128, 192, 128
    batch, seq = 2, 8
    w1, w2, w3 = _init_params(kp, dim, hidden_dim_arg, multiple_of)
    x = jax.random.normal(kx, (batch, seq, dim), jnp.float32)

    out = jax.block_until_ready(parallel_gated_mlp(x, w1, w2, w3))
    ref = _ref_mlp(x, w1, w2, w3)
    assert out.shape == ref.shape, (out.shape, ref.shape)
    # bf16 matmul inputs with f32 accumulation -> loose tolerance vs f32 ref.
    assert jnp.allclose(out, ref, atol=5e-2, rtol=5e-2), \
        float(jnp.abs(out - ref).max())

    # --- Config 2: out_dim=dim (project back to model dim, common module use),
    #     hidden=1024 with tn=256 -> 4 H steps exercising the accumulator,
    #     M=60 with tm=32 -> 2 M steps + ragged-row padding. ------------------
    kx2, kp2 = jax.random.split(kp)
    w1b, w2b, w3b = _init_params(kp2, 128, 1536, 128, out_dim=128)
    x2 = jax.random.normal(kx2, (3, 20, 128), jnp.float32)
    out2 = jax.block_until_ready(
        parallel_gated_mlp(x2, w1b, w2b, w3b, tm=32, tn=256))
    ref2 = _ref_mlp(x2, w1b, w2b, w3b)
    assert out2.shape == ref2.shape, (out2.shape, ref2.shape)
    assert jnp.allclose(out2, ref2, atol=5e-2, rtol=5e-2), \
        float(jnp.abs(out2 - ref2).max())

    print("KERNEL_OK")
</pallas_src>

<mosaic_0001>
module attributes {stable_mosaic.version = 11 : i64} {
  func.func @_gated_mlp_kernel(%arg0: i32, %arg1: i32, %arg2: memref<16x128xbf16, #tpu.memory_space<vmem>>, %arg3: memref<128x256xbf16, #tpu.memory_space<vmem>>, %arg4: memref<128x128xbf16, #tpu.memory_space<vmem>>, %arg5: memref<16x128xf32, #tpu.memory_space<vmem>>, %arg6: memref<16x128xf32, #tpu.memory_space<vmem>>) attributes {dimension_semantics = [#tpu.dimension_semantics<parallel>, #tpu.dimension_semantics<arbitrary>], iteration_bounds = array<i64: 1, 1>, scalar_prefetch = 0 : i64, scratch_operands = 1 : i64, tpu.core_type = #tpu.core_type<tc>, window_params = [{transform_indices = @transform_0, window_bounds = array<i64: 16, 128>}, {transform_indices = @transform_1, window_bounds = array<i64: 128, 256>}, {transform_indices = @transform_2, window_bounds = array<i64: 128, 128>}, {transform_indices = @transform_3, window_bounds = array<i64: 16, 128>}]} {
    %c0 = arith.constant 0 : index
    %c0_0 = arith.constant 0 : index
    %0 = vector.load %arg2[%c0, %c0_0] : memref<16x128xbf16, #tpu.memory_space<vmem>>, vector<16x128xbf16>
    %c0_1 = arith.constant 0 : index
    %c0_2 = arith.constant 0 : index
    %1 = vector.load %arg3[%c0_1, %c0_2] : memref<128x256xbf16, #tpu.memory_space<vmem>>, vector<128x256xbf16>
    %cst = arith.constant dense<0.000000e+00> : vector<16x256xf32>
    %2 = tpu.matmul %0, %1, %cst {dimension_numbers = #tpu.dot_dimension_numbers<[1], [0], [0], [1], [0, 0, 1, 1], [], []>} : vector<16x128xbf16>, vector<128x256xbf16>, vector<16x256xf32> -> vector<16x256xf32>
    %3 = vector.extract_strided_slice %2 {offsets = [0, 0], sizes = [16, 128], strides = [1, 1]} : vector<16x256xf32> to vector<16x128xf32>
    %4 = vector.extract_strided_slice %2 {offsets = [0, 128], sizes = [16, 128], strides = [1, 1]} : vector<16x256xf32> to vector<16x128xf32>
    %5 = arith.negf %3 : vector<16x128xf32>
    %6 = math.exp %5 : vector<16x128xf32>
    %cst_3 = arith.constant 1.000000e+00 : f32
    %7 = vector.broadcast %cst_3 : f32 to vector<16x128xf32>
    %8 = arith.addf %7, %6 : vector<16x128xf32>
    %9 = arith.divf %7, %8 : vector<16x128xf32>
    %10 = arith.mulf %3, %9 : vector<16x128xf32>
    %11 = arith.mulf %10, %4 : vector<16x128xf32>
    %12 = arith.truncf %11 : vector<16x128xf32> to vector<16x128xbf16>
    %c0_4 = arith.constant 0 : index
    %c0_5 = arith.constant 0 : index
    %13 = vector.load %arg4[%c0_4, %c0_5] : memref<128x128xbf16, #tpu.memory_space<vmem>>, vector<128x128xbf16>
    %cst_6 = arith.constant dense<0.000000e+00> : vector<16x128xf32>
    %14 = tpu.matmul %12, %13, %cst_6 {dimension_numbers = #tpu.dot_dimension_numbers<[1], [0], [0], [1], [0, 0, 1, 1], [], []>} : vector<16x128xbf16>, vector<128x128xbf16>, vector<16x128xf32> -> vector<16x128xf32>
    %c0_i32 = arith.constant 0 : i32
    %15 = arith.cmpi eq, %arg1, %c0_i32 : i32
    %16 = arith.extui %15 : i1 to i32
    %c0_i32_7 = arith.constant 0 : i32
    %17 = arith.cmpi ne, %16, %c0_i32_7 : i32
    scf.if %17 {
      %c0_12 = arith.constant 0 : index
      %c0_13 = arith.constant 0 : index
      %24 = vector.load %arg6[%c0_12, %c0_13] : memref<16x128xf32, #tpu.memory_space<vmem>>, vector<16x128xf32>
      tpu.vector_store %arg6[%c0_12, %c0_13], %14 {strides = array<i32>} : memref<16x128xf32, #tpu.memory_space<vmem>>, vector<16x128xf32>,
    } else {
    }
    %c0_i32_8 = arith.constant 0 : i32
    %18 = arith.cmpi sgt, %arg1, %c0_i32_8 : i32
    %19 = arith.extui %18 : i1 to i32
    %c0_i32_9 = arith.constant 0 : i32
    %20 = arith.cmpi ne, %19, %c0_i32_9 : i32
    scf.if %20 {
      %c0_12 = arith.constant 0 : index
      %c0_13 = arith.constant 0 : index
      %24 = vector.load %arg6[%c0_12, %c0_13] : memref<16x128xf32, #tpu.memory_space<vmem>>, vector<16x128xf32>
      %25 = arith.addf %24, %14 : vector<16x128xf32>
      %c0_14 = arith.constant 0 : index
      %c0_15 = arith.constant 0 : index
      %26 = vector.load %arg6[%c0_14, %c0_15] : memref<16x128xf32, #tpu.memory_space<vmem>>, vector<16x128xf32>
      tpu.vector_store %arg6[%c0_14, %c0_15], %25 {strides = array<i32>} : memref<16x128xf32, #tpu.memory_space<vmem>>, vector<16x128xf32>,
    } else {
    }
    %c0_i32_10 = arith.constant 0 : i32
    %21 = arith.cmpi eq, %arg1, %c0_i32_10 : i32
    %22 = arith.extui %21 : i1 to i32
    %c0_i32_11 = arith.constant 0 : i32
    %23 = arith.cmpi ne, %22, %c0_i32_11 : i32
    scf.if %23 {
      %c0_12 = arith.constant 0 : index
      %c0_13 = arith.constant 0 : index
      %24 = vector.load %arg6[%c0_12, %c0_13] : memref<16x128xf32, #tpu.memory_space<vmem>>, vector<16x128xf32>
      %c0_14 = arith.constant 0 : index
      %c0_15 = arith.constant 0 : index
      %25 = vector.load %arg5[%c0_14, %c0_15] : memref<16x128xf32, #tpu.memory_space<vmem>>, vector<16x128xf32>
      tpu.vector_store %arg5[%c0_14, %c0_15], %24 {strides = array<i32>} : memref<16x128xf32, #tpu.memory_space<vmem>>, vector<16x128xf32>,
    } else {
    }
    return
  }
  func.func @transform_0(%arg0: i32, %arg1: i32) -> (i32, i32) {
    %c0_i32 = arith.constant 0 : i32
    %c0_i32_0 = arith.constant 0 : i32
    return %arg0, %c0_i32 : i32, i32
  }
  func.func @transform_1(%arg0: i32, %arg1: i32) -> (i32, i32) {
    %c0_i32 = arith.constant 0 : i32
    %c0_i32_0 = arith.constant 0 : i32
    return %c0_i32, %arg1 : i32, i32
  }
  func.func @transform_2(%arg0: i32, %arg1: i32) -> (i32, i32) {
    %c0_i32 = arith.constant 0 : i32
    %c0_i32_0 = arith.constant 0 : i32
    return %arg1, %c0_i32 : i32, i32
  }
  func.func @transform_3(%arg0: i32, %arg1: i32) -> (i32, i32) {
    %c0_i32 = arith.constant 0 : i32
    %c0_i32_0 = arith.constant 0 : i32
    return %arg0, %c0_i32 : i32, i32
  }
}

</mosaic_0001>

<llo_original>
// kernel: parallel_gated_mlp.1
$region0: #{parallel_gated_mlp.1}
  #allocation0 [shape = 'u32[]', space=smem, size = 0x4, offset = 0x4, fixed_abs, tag = 'smem constant byte address 0x4 - core index']
  #allocation1 [shape = 'u32[144,128]{1,0:T(1,128)}', space=vmem, size = 0x12000, scoped, tag = 'internal scratch']
  #allocation2 [shape = 'f32[16,128]{1,0:T(8,128)}', space=vmem, size = 0x2000, scoped, tag = 'scratch operand']
  %s0 = inlined_call_operand.vmem [shape: bf16[16,128], index: 0, kind: input, shape index: {}]
  %s1 = inlined_call_operand.vmem [shape: bf16[128,256], index: 1, kind: input, shape index: {}]
  %s2 = inlined_call_operand.vmem [shape: bf16[128,128], index: 2, kind: input, shape index: {}]
  %s3 = inlined_call_operand.hbm [shape: f32[16,128], index: 3, kind: output, shape index: {}]
  %s4 = sld [smem:[#allocation0]]
  $region34: #{parallel_gated_mlp.1} parent=0
    _
  %s6 = ssub.s32 1, %s4
  %s7 = scalar_select 0, %s6, %s4
  $region1: #{parallel_gated_mlp.1} parent=0
    #allocation3 [shape = 'u8[8192]{0}', space=vmem, size = 0x2000, scoped, tag = 'output window, operand 0, single buffered']
    #allocation4 [shape = 's32[1]{0}', space=sflag, size = 0x4, scoped, tag = 'scoped memory for parallel_gated_mlp.1']
    %8 = vsyncpa [#allocation4], 0
    // Predicated region
    $region2: #{parallel_gated_mlp.1} parent=1 // pred_check
      _
    $region3: #{parallel_gated_mlp.1} parent=1 // pred_check_branch
      %10 = sbr.rel (0) target = $region5
    $region4: #{parallel_gated_mlp.1} parent=1 // pred_region
      _
    $region5: #{parallel_gated_mlp.1} parent=1 // pred_fallthru
      _
    // Predicated region
    $region6: #{parallel_gated_mlp.1} parent=1 // pred_check
      _
    $region7: #{parallel_gated_mlp.1} parent=1 // pred_check_branch
      %12 = sbr.rel (0) target = $region9
    $region8: #{parallel_gated_mlp.1} parent=1 // pred_region
      _
    $region9: #{parallel_gated_mlp.1} parent=1 // pred_fallthru
      _
    // Predicated region
    $region10: #{parallel_gated_mlp.1} parent=1 // pred_check
      _
    $region11: #{parallel_gated_mlp.1} parent=1 // pred_check_branch
      %14 = sbr.rel (0) target = $region13
    $region12: #{parallel_gated_mlp.1} parent=1 // pred_region
      _
    $region13: #{parallel_gated_mlp.1} parent=1 // pred_fallthru
      _
    %v16 = vld [vmem:[%s0] sm:$0xf]
    %v17 = vld [vmem:[%s0 + $0x4] sm:$0xf]
    %v18 = vld [vmem:[%s1] sm:$0xff]
    %v19 = vld [vmem:[%s1 + $0x8] sm:$0xff]
    %v20 = vld [vmem:[%s1 + $0x10] sm:$0xff]
    %v21 = vld [vmem:[%s1 + $0x18] sm:$0xff]
    %v22 = vld [vmem:[%s1 + $0x20] sm:$0xff]
    %v23 = vld [vmem:[%s1 + $0x28] sm:$0xff]
    %v24 = vld [vmem:[%s1 + $0x30] sm:$0xff]
    %v25 = vld [vmem:[%s1 + $0x38] sm:$0xff]
    %v26 = vld [vmem:[%s1 + $0x40] sm:$0xff]
    %v27 = vld [vmem:[%s1 + $0x48] sm:$0xff]
    %v28 = vld [vmem:[%s1 + $0x50] sm:$0xff]
    %v29 = vld [vmem:[%s1 + $0x58] sm:$0xff]
    %v30 = vld [vmem:[%s1 + $0x60] sm:$0xff]
    %v31 = vld [vmem:[%s1 + $0x68] sm:$0xff]
    %v32 = vld [vmem:[%s1 + $0x70] sm:$0xff]
    %v33 = vld [vmem:[%s1 + $0x78] sm:$0xff]
    %v36 = vunpack.c.l.b16 %v16
    %v37 = vunpack.c.l.b16 %v17
    %v38 = vpack.c.b16 %v37, %v36
    %v56 = vunpack.c.l.b16 %v18
    %v57 = vunpack.c.h.b16 %v18
    %v58 = vunpack.c.l.b16 %v19
    %v59 = vunpack.c.h.b16 %v19
    %v60 = vunpack.c.l.b16 %v20
    %v61 = vunpack.c.h.b16 %v20
    %v62 = vunpack.c.l.b16 %v21
    %v63 = vunpack.c.h.b16 %v21
    %v64 = vunpack.c.l.b16 %v22
    %v65 = vunpack.c.h.b16 %v22
    %v66 = vunpack.c.l.b16 %v23
    %v67 = vunpack.c.h.b16 %v23
    %v68 = vunpack.c.l.b16 %v24
    %v69 = vunpack.c.h.b16 %v24
    %v70 = vunpack.c.l.b16 %v25
    %v71 = vunpack.c.h.b16 %v25
    %v72 = vunpack.c.l.b16 %v26
    %v73 = vunpack.c.h.b16 %v26
    %v74 = vunpack.c.l.b16 %v27
    %v75 = vunpack.c.h.b16 %v27
    %v76 = vunpack.c.l.b16 %v28
    %v77 = vunpack.c.h.b16 %v28
    %v78 = vunpack.c.l.b16 %v29
    %v79 = vunpack.c.h.b16 %v29
    %v80 = vunpack.c.l.b16 %v30
    %v81 = vunpack.c.h.b16 %v30
    %v82 = vunpack.c.l.b16 %v31
    %v83 = vunpack.c.h.b16 %v31
    %v84 = vunpack.c.l.b16 %v32
    %v85 = vunpack.c.h.b16 %v32
    %v86 = vunpack.c.l.b16 %v33
    %v87 = vunpack.c.h.b16 %v33
    %v88 = vpack.c.b16 %v58, %v56
    %v89 = vpack.c.b16 %v59, %v57
    %v90 = vpack.c.b16 %v62, %v60
    %v91 = vpack.c.b16 %v63, %v61
    %v92 = vpack.c.b16 %v66, %v64
    %v93 = vpack.c.b16 %v67, %v65
    %v94 = vpack.c.b16 %v70, %v68
    %v95 = vpack.c.b16 %v71, %v69
    %v96 = vpack.c.b16 %v74, %v72
    %v97 = vpack.c.b16 %v75, %v73
    %v98 = vpack.c.b16 %v78, %v76
    %v99 = vpack.c.b16 %v79, %v77
    %v100 = vpack.c.b16 %v82, %v80
    %v101 = vpack.c.b16 %v83, %v81
    %v102 = vpack.c.b16 %v86, %v84
    %v103 = vpack.c.b16 %v87, %v85
    %120 = vmatprep.subr.bf16.mxu0 %v89
    %121 = vmatpush1.bf16.msra.mxu0 %v88
    %122 = vmatprep.subr.bf16.mxu0 %v91
    %123 = vmatpush1.bf16.msra.mxu0 %v90
    %124 = vmatprep.subr.bf16.mxu0 %v93
    %125 = vmatpush1.bf16.msra.mxu0 %v92
    %126 = vmatprep.subr.bf16.mxu0 %v95
    %127 = vmatpush1.bf16.msra.mxu0 %v94
    %128 = vmatprep.subr.bf16.mxu0 %v97
    %129 = vmatpush1.bf16.msra.mxu0 %v96
    %130 = vmatprep.subr.bf16.mxu0 %v99
    %131 = vmatpush1.bf16.msra.mxu0 %v98
    %132 = vmatprep.subr.bf16.mxu0 %v101
    %133 = vmatpush1.bf16.msra.mxu0 %v100
    %134 = vmatprep.subr.bf16.mxu0 %v103
    %135 = vmatpush1.bf16.msra.mxu0 %v102
    %136 = vmatprep.subr.bf16.mxu0 0
    %137 = vmatpush1.bf16.msra.mxu0 0
    %138 = vmatprep.subr.bf16.mxu0 0
    %139 = vmatpush1.bf16.msra.mxu0 0
    %140 = vmatprep.subr.bf16.mxu0 0
    %141 = vmatpush1.bf16.msra.mxu0 0
    %142 = vmatprep.subr.bf16.mxu0 0
    %143 = vmatpush1.bf16.msra.mxu0 0
    %144 = vmatprep.subr.bf16.mxu0 0
    %145 = vmatpush1.bf16.msra.mxu0 0
    %146 = vmatprep.subr.bf16.mxu0 0
    %147 = vmatpush1.bf16.msra.mxu0 0
    %148 = vmatprep.subr.bf16.mxu0 0
    %149 = vmatpush1.bf16.msra.mxu0 0
    %150 = vmatprep.subr.bf16.mxu0 0
    %151 = vmatpush1.bf16.msra.mxu0 0
    %152 = vmatprep.mubr.bf16.mxu0 0
    %153 = vmatmul.mubr.bf16.gmra.mrb[0].mxu0 %v38
    %v154 = vpop.f32.mrb[0].mxu0
    %v155 = vadd.f32 0.0, %v154
    %v156 = vpop.f32.mrb[0].mxu0
    %v157 = vadd.f32 0.0, %v156
    %v158 = vpop.f32.mrb[0].mxu0
    %v159 = vadd.f32 0.0, %v158
    %v160 = vpop.f32.mrb[0].mxu0
    %v161 = vadd.f32 0.0, %v160
    %162 = vdwg.mxu0
    %v163 = vxor.u32 %v155, 2147483648
    %v164 = vxor.u32 %v159, 2147483648
    %v165 = vmul.f32 %v163, 1.442695
    %v166 = vpow.pop %v165
    %v167 = vmul.f32 %v164, 1.442695
    %v168 = vpow.pop %v167
    %v169 = vadd.f32 %v166, 1.0
    %v170 = vadd.f32 %v168, 1.0
    %v171 = vrcp.pop %v169
    %v172 = vmul.f32 1.0, %v171
    %v173 = vrcp.pop %v170
    %v174 = vmul.f32 1.0, %v173
    %v175 = vmul.f32 %v155, %v172
    %v176 = vmul.f32 %v159, %v174
    %v177 = vmul.f32 %v175, %v157
    %v178 = vmul.f32 %v176, %v161
    %v179 = vpack.c.bf16 %v178, %v177
    %v180 = vld [vmem:[%s2] sm:$0xf]
    %v181 = vld [vmem:[%s2 + $0x4] sm:$0xf]
    %v182 = vld [vmem:[%s2 + $0x8] sm:$0xf]
    %v183 = vld [vmem:[%s2 + $0xc] sm:$0xf]
    %v184 = vld [vmem:[%s2 + $0x10] sm:$0xf]
    %v185 = vld [vmem:[%s2 + $0x14] sm:$0xf]
    %v186 = vld [vmem:[%s2 + $0x18] sm:$0xf]
    %v187 = vld [vmem:[%s2 + $0x1c] sm:$0xf]
    %v188 = vld [vmem:[%s2 + $0x20] sm:$0xf]
    %v189 = vld [vmem:[%s2 + $0x24] sm:$0xf]
    %v190 = vld [vmem:[%s2 + $0x28] sm:$0xf]
    %v191 = vld [vmem:[%s2 + $0x2c] sm:$0xf]
    %v192 = vld [vmem:[%s2 + $0x30] sm:$0xf]
    %v193 = vld [vmem:[%s2 + $0x34] sm:$0xf]
    %v194 = vld [vmem:[%s2 + $0x38] sm:$0xf]
    %v195 = vld [vmem:[%s2 + $0x3c] sm:$0xf]
    %v212 = vunpack.c.l.b16 %v180
    %v213 = vunpack.c.l.b16 %v181
    %v214 = vunpack.c.l.b16 %v182
    %v215 = vunpack.c.l.b16 %v183
    %v216 = vunpack.c.l.b16 %v184
    %v217 = vunpack.c.l.b16 %v185
    %v218 = vunpack.c.l.b16 %v186
    %v219 = vunpack.c.l.b16 %v187
    %v220 = vunpack.c.l.b16 %v188
    %v221 = vunpack.c.l.b16 %v189
    %v222 = vunpack.c.l.b16 %v190
    %v223 = vunpack.c.l.b16 %v191
    %v224 = vunpack.c.l.b16 %v192
    %v225 = vunpack.c.l.b16 %v193
    %v226 = vunpack.c.l.b16 %v194
    %v227 = vunpack.c.l.b16 %v195
    %v228 = vpack.c.b16 %v213, %v212
    %v229 = vpack.c.b16 %v215, %v214
    %v230 = vpack.c.b16 %v217, %v216
    %v231 = vpack.c.b16 %v219, %v218
    %v232 = vpack.c.b16 %v221, %v220
    %v233 = vpack.c.b16 %v223, %v222
    %v234 = vpack.c.b16 %v225, %v224
    %v235 = vpack.c.b16 %v227, %v226
    %244 = vmatprep.subr.bf16.mxu0 0
    %245 = vmatpush1.bf16.msra.mxu0 %v228
    %246 = vmatprep.subr.bf16.mxu0 0
    %247 = vmatpush1.bf16.msra.mxu0 %v229
    %248 = vmatprep.subr.bf16.mxu0 0
    %249 = vmatpush1.bf16.msra.mxu0 %v230
    %250 = vmatprep.subr.bf16.mxu0 0
    %251 = vmatpush1.bf16.msra.mxu0 %v231
    %252 = vmatprep.subr.bf16.mxu0 0
    %253 = vmatpush1.bf16.msra.mxu0 %v232
    %254 = vmatprep.subr.bf16.mxu0 0
    %255 = vmatpush1.bf16.msra.mxu0 %v233
    %256 = vmatprep.subr.bf16.mxu0 0
    %257 = vmatpush1.bf16.msra.mxu0 %v234
    %258 = vmatprep.subr.bf16.mxu0 0
    %259 = vmatpush1.bf16.msra.mxu0 %v235
    %260 = vmatprep.subr.bf16.mxu0 0
    %261 = vmatpush1.bf16.msra.mxu0 0
    %262 = vmatprep.subr.bf16.mxu0 0
    %263 = vmatpush1.bf16.msra.mxu0 0
    %264 = vmatprep.subr.bf16.mxu0 0
    %265 = vmatpush1.bf16.msra.mxu0 0
    %266 = vmatprep.subr.bf16.mxu0 0
    %267 = vmatpush1.bf16.msra.mxu0 0
    %268 = vmatprep.subr.bf16.mxu0 0
    %269 = vmatpush1.bf16.msra.mxu0 0
    %270 = vmatprep.subr.bf16.mxu0 0
    %271 = vmatpush1.bf16.msra.mxu0 0
    %272 = vmatprep.subr.bf16.mxu0 0
    %273 = vmatpush1.bf16.msra.mxu0 0
    %274 = vmatprep.subr.bf16.mxu0 0
    %275 = vmatpush1.bf16.msra.mxu0 0
    %276 = vmatprep.mubr.bf16.mxu0 0
    %277 = vmatmul.mubr.bf16.gmra.mrb[0].mxu0 %v179
    %v278 = vpop.f32.mrb[0].mxu0
    %v279 = vadd.f32 0.0, %v278
    %v280 = vpop.f32.mrb[0].mxu0
    %v281 = vpop.f32.mrb[0].mxu0
    %v282 = vadd.f32 0.0, %v281
    %v283 = vpop.f32.mrb[0].mxu0
    %284 = vdwg.mxu0
    %p285 = scmp.eq.s32.totalorder 0, 0
    // Predicated region
    $region14: #{parallel_gated_mlp.1} parent=1 // pred_check
      %p286 = pneg %p285
    $region15: #{parallel_gated_mlp.1} parent=1 // pred_check_branch
      %288 = sbr.rel (%p286) target = $region17
    $region16: #{parallel_gated_mlp.1} parent=1 // pred_region
      %289 = vst [vmem:[#allocation2] sm:$0xff] %v279
      %290 = vst [vmem:[#allocation2 + $0x8] sm:$0xff] %v282
    $region17: #{parallel_gated_mlp.1} parent=1 // pred_fallthru
      _
    %p291 = scmp.gt.s32.totalorder 0, 0
    // Predicated region
    $region18: #{parallel_gated_mlp.1} parent=1 // pred_check
      %p292 = pneg %p291
    $region19: #{parallel_gated_mlp.1} parent=1 // pred_check_branch
      %294 = sbr.rel (%p292) target = $region21
    $region20: #{parallel_gated_mlp.1} parent=1 // pred_region
      %v295 = vld [vmem:[#allocation2] sm:$0xff]
      %v296 = vld [vmem:[#allocation2 + $0x8] sm:$0xff]
      %v297 = vadd.f32 %v295, %v279
      %v298 = vadd.f32 %v296, %v282
      %299 = vst [vmem:[#allocation2] sm:$0xff] %v297
      %300 = vst [vmem:[#allocation2 + $0x8] sm:$0xff] %v298
    $region21: #{parallel_gated_mlp.1} parent=1 // pred_fallthru
      _
    // Predicated region
    $region22: #{parallel_gated_mlp.1} parent=1 // pred_check
      %p301 = pneg %p285
    $region23: #{parallel_gated_mlp.1} parent=1 // pred_check_branch
      %303 = sbr.rel (%p301) target = $region25
    $region24: #{parallel_gated_mlp.1} parent=1 // pred_region
      %v304 = vld [vmem:[#allocation2] sm:$0xff]
      %v305 = vld [vmem:[#allocation2 + $0x8] sm:$0xff]
      %306 = vst [vmem:[#allocation3] sm:$0xff] %v304
      %307 = vst [vmem:[#allocation3 + $0x8] sm:$0xff] %v305
    $region25: #{parallel_gated_mlp.1} parent=1 // pred_fallthru
      _
    // Predicated region
    $region26: #{parallel_gated_mlp.1} parent=1 // pred_check
      _
    $region27: #{parallel_gated_mlp.1} parent=1 // pred_check_branch
      %309 = sbr.rel (0) target = $region29
    $region28: #{parallel_gated_mlp.1} parent=1 // pred_region
      %s311 = ssub.s32 256, 256
      %312 = vsyncadd [#allocation4], %s311
      %s313 = sshll.u32 [#allocation3], 4
      %s314 = int_to_ptr.vmem [resolvable:$true] %s313
      %319 = dma.vmem_to_hbm [thread:$0]  %s314, 256, %s3, [#allocation4], 128, 128, 8
    $region29: #{parallel_gated_mlp.1} parent=1 // pred_fallthru
      _
    // Predicated region
    $region30: #{parallel_gated_mlp.1} parent=1 // pred_check
      _
    $region31: #{parallel_gated_mlp.1} parent=1 // pred_check_branch
      %321 = sbr.rel (0) target = $region33
    $region32: #{parallel_gated_mlp.1} parent=1 // pred_region
      %322 = dma.done [#allocation4], 256
    $region33: #{parallel_gated_mlp.1} parent=1 // pred_fallthru
      _
    %323 = vsyncpa [#allocation4], 1

</llo_original>
